<compile_context>
chip_gen: v7x
topology: tpu7x:2x2x1
jax: 0.10.0
libtpu: 0.0.40
codegen_flags: <defaults>
</compile_context>

<pallas_src>
import jax
import jax.numpy as jnp
from jax.experimental import pallas as pl
from jax.experimental.pallas import tpu as pltpu


def _round_up(x, m):
    return ((x + m - 1) // m) * m


def _subm_conv1x1_kernel(x_ref, w_ref, b_ref, o_ref):
    """One spatial tile: masked (submanifold) 1x1 conv, channels on sublanes."""
    x = x_ref[...]                                   # (C_in, TN), lanes = sites
    w = w_ref[...]                                   # (C_out, C_in)
    c_out, c_in = w.shape

    # Submanifold mask: a site is active iff any input channel is nonzero.
    # TODO(synk): if the caller exposes the sparse tensor's index list, drive
    # this mask (and a gather/scatter over only active rows) from it instead:
    # exact spconv semantics (bias at genuinely-active all-zero sites) and
    # ~3x less HBM traffic at ~70% sparsity.
    active = jnp.max(jnp.abs(x), axis=0, keepdims=True) > 0.0   # (1, TN)

    # 1x1 conv as an unrolled VPU FMA over the tiny input-channel axis.
    acc = w[:, 0:1] * x[0:1, :]                      # (C_out, TN)
    for i in range(1, c_in):
        acc = acc + w[:, i:i + 1] * x[i:i + 1, :]
    acc = acc + b_ref[...]                           # (C_out, 1) lane-broadcast

    o_ref[...] = jnp.where(active, acc, 0.0).astype(o_ref.dtype)


def occupancy_predictor(x_nchw, weight, bias, *, tile_n=2048):
    """x_nchw: (B, C_in, H, W); weight: (C_in, C_out); bias: (C_out,).

    Returns the densified sparse output: (B, C_out, H, W), zero at inactive
    input sites.
    """
    B, C_in, H, W = x_nchw.shape
    C_out = weight.shape[1]
    HW = H * W

    # Lane-dense tile over the flat spatial axis: multiple of 128 lanes, as
    # large as useful (up to tile_n) to amortize per-grid-step overhead.
    tn = min(tile_n, _round_up(HW, 128))
    hw_pad = _round_up(HW, tn)

    # Free reshape: NCHW -> (B, C_in, H*W); no transpose touches HBM.
    x_flat = x_nchw.reshape(B, C_in, HW)
    if hw_pad != HW:
        # Padded sites are all-zero -> masked to zero by the kernel.
        x_flat = jnp.pad(x_flat, ((0, 0), (0, 0), (0, hw_pad - HW)))

    w_t = jnp.transpose(weight)        # (C_out, C_in): 4x8, negligible
    b_col = bias.reshape(C_out, 1)

    out_flat = pl.pallas_call(
        _subm_conv1x1_kernel,
        out_shape=jax.ShapeDtypeStruct((B, C_out, hw_pad), x_flat.dtype),
        grid_spec=pltpu.PrefetchScalarGridSpec(
            num_scalar_prefetch=0,
            grid=(B, hw_pad // tn),
            in_specs=[
                pl.BlockSpec((pl.Squeezed(), C_in, tn), lambda b, j: (b, 0, j)),
                pl.BlockSpec((C_out, C_in), lambda b, j: (0, 0)),
                pl.BlockSpec((C_out, 1), lambda b, j: (0, 0)),
            ],
            out_specs=pl.BlockSpec(
                (pl.Squeezed(), C_out, tn), lambda b, j: (b, 0, j)),
        ),
        compiler_params=pltpu.CompilerParams(
            dimension_semantics=("parallel", "parallel")),
    )(x_flat, w_t, b_col)

    if hw_pad != HW:
        out_flat = out_flat[:, :, :HW]
    return out_flat.reshape(B, C_out, H, W)


if __name__ == "__main__":
    key = jax.random.PRNGKey(0)
    k_x, k_mask, k_w, k_b = jax.random.split(key, 4)

    # Small shapes consistent with the module's forward.
    B, C_in, H, W = 2, 4, 16, 16
    out_classes = 8

    # SubMConv2d with kernel_size=1 -> weight collapses to (C_in, C_out) + bias.
    weight = jax.random.normal(k_w, (C_in, out_classes), jnp.float32) * 0.1
    bias = jax.random.normal(k_b, (out_classes,), jnp.float32) * 0.1

    # Sparse-ish NCHW input: ~70% of spatial sites empty (all-zero across
    # channels), mimicking the sparse tensor the module consumes.
    x_dense = jax.random.normal(k_x, (B, C_in, H, W), jnp.float32)
    site_active = (
        jax.random.uniform(k_mask, (B, 1, H, W)) < 0.3
    ).astype(jnp.float32)
    x = x_dense * site_active

    out = occupancy_predictor(x, weight, bias)
    out = jax.block_until_ready(out)

    # Reference in plain JAX: masked 1x1 conv.
    active = jnp.any(x != 0, axis=1, keepdims=True)  # (B,1,H,W)
    ref = jnp.einsum("bchw,co->bohw", x, weight) + bias.reshape(1, -1, 1, 1)
    ref = jnp.where(active, ref, 0.0)
    assert out.shape == (B, out_classes, H, W)
    assert jnp.allclose(out, ref, atol=1e-5, rtol=1e-5)

    print("KERNEL_OK")
</pallas_src>

<mosaic_0001>
module attributes {stable_mosaic.version = 11 : i64} {
  func.func @_subm_conv1x1_kernel(%arg0: i32, %arg1: i32, %arg2: memref<1x4x256xf32, #tpu.memory_space<vmem>>, %arg3: memref<8x4xf32, #tpu.memory_space<vmem>>, %arg4: memref<8x1xf32, #tpu.memory_space<vmem>>, %arg5: memref<1x8x256xf32, #tpu.memory_space<vmem>>) attributes {dimension_semantics = [#tpu.dimension_semantics<parallel>, #tpu.dimension_semantics<parallel>], iteration_bounds = array<i64: 2, 1>, scalar_prefetch = 0 : i64, scratch_operands = 0 : i64, tpu.core_type = #tpu.core_type<tc>, window_params = [{transform_indices = @transform_0, window_bounds = array<i64: 1, 4, 256>}, {pipeline_mode = #tpu.pipeline_mode<synchronous>, transform_indices = @transform_1, window_bounds = array<i64: 8, 4>}, {pipeline_mode = #tpu.pipeline_mode<synchronous>, transform_indices = @transform_2, window_bounds = array<i64: 8, 1>}, {transform_indices = @transform_3, window_bounds = array<i64: 1, 8, 256>}]} {
    %c0 = arith.constant 0 : index
    %c0_0 = arith.constant 0 : index
    %c0_1 = arith.constant 0 : index
    %0 = vector.load %arg2[%c0, %c0_0, %c0_1] : memref<1x4x256xf32, #tpu.memory_space<vmem>>, vector<1x4x256xf32>
    %1 = vector.shape_cast %0 : vector<1x4x256xf32> to vector<4x256xf32>
    %c0_2 = arith.constant 0 : index
    %c0_3 = arith.constant 0 : index
    %2 = vector.load %arg3[%c0_2, %c0_3] : memref<8x4xf32, #tpu.memory_space<vmem>>, vector<8x4xf32>
    %3 = math.absf %1 : vector<4x256xf32>
    %cst = arith.constant dense<0xFF800000> : vector<256xf32>
    %4 = vector.multi_reduction <maximumf>, %3, %cst [0] : vector<4x256xf32> to vector<256xf32>
    %5 = vector.shape_cast %4 : vector<256xf32> to vector<1x256xf32>
    %cst_4 = arith.constant 0.000000e+00 : f32
    %6 = vector.broadcast %cst_4 : f32 to vector<1x256xf32>
    %7 = arith.cmpf ogt, %5, %6 : vector<1x256xf32>
    %8 = vector.extract_strided_slice %2 {offsets = [0, 0], sizes = [8, 1], strides = [1, 1]} : vector<8x4xf32> to vector<8x1xf32>
    %9 = vector.extract_strided_slice %1 {offsets = [0, 0], sizes = [1, 256], strides = [1, 1]} : vector<4x256xf32> to vector<1x256xf32>
    %10 = vector.broadcast %8 : vector<8x1xf32> to vector<8x256xf32>
    %11 = vector.broadcast %9 : vector<1x256xf32> to vector<8x256xf32>
    %12 = arith.mulf %10, %11 : vector<8x256xf32>
    %13 = vector.extract_strided_slice %2 {offsets = [0, 1], sizes = [8, 1], strides = [1, 1]} : vector<8x4xf32> to vector<8x1xf32>
    %14 = vector.extract_strided_slice %1 {offsets = [1, 0], sizes = [1, 256], strides = [1, 1]} : vector<4x256xf32> to vector<1x256xf32>
    %15 = vector.broadcast %13 : vector<8x1xf32> to vector<8x256xf32>
    %16 = vector.broadcast %14 : vector<1x256xf32> to vector<8x256xf32>
    %17 = arith.mulf %15, %16 : vector<8x256xf32>
    %18 = arith.addf %12, %17 : vector<8x256xf32>
    %19 = vector.extract_strided_slice %2 {offsets = [0, 2], sizes = [8, 1], strides = [1, 1]} : vector<8x4xf32> to vector<8x1xf32>
    %20 = vector.extract_strided_slice %1 {offsets = [2, 0], sizes = [1, 256], strides = [1, 1]} : vector<4x256xf32> to vector<1x256xf32>
    %21 = vector.broadcast %19 : vector<8x1xf32> to vector<8x256xf32>
    %22 = vector.broadcast %20 : vector<1x256xf32> to vector<8x256xf32>
    %23 = arith.mulf %21, %22 : vector<8x256xf32>
    %24 = arith.addf %18, %23 : vector<8x256xf32>
    %25 = vector.extract_strided_slice %2 {offsets = [0, 3], sizes = [8, 1], strides = [1, 1]} : vector<8x4xf32> to vector<8x1xf32>
    %26 = vector.extract_strided_slice %1 {offsets = [3, 0], sizes = [1, 256], strides = [1, 1]} : vector<4x256xf32> to vector<1x256xf32>
    %27 = vector.broadcast %25 : vector<8x1xf32> to vector<8x256xf32>
    %28 = vector.broadcast %26 : vector<1x256xf32> to vector<8x256xf32>
    %29 = arith.mulf %27, %28 : vector<8x256xf32>
    %30 = arith.addf %24, %29 : vector<8x256xf32>
    %c0_5 = arith.constant 0 : index
    %c0_6 = arith.constant 0 : index
    %31 = vector.load %arg4[%c0_5, %c0_6] : memref<8x1xf32, #tpu.memory_space<vmem>>, vector<8x1xf32>
    %32 = vector.broadcast %31 : vector<8x1xf32> to vector<8x256xf32>
    %33 = arith.addf %30, %32 : vector<8x256xf32>
    %cst_7 = arith.constant 0.000000e+00 : f32
    %34 = vector.shape_cast %7 : vector<1x256xi1> to vector<1x256xi1>
    %35 = vector.broadcast %34 : vector<1x256xi1> to vector<8x256xi1>
    %36 = vector.broadcast %cst_7 : f32 to vector<8x256xf32>
    %37 = arith.select %35, %33, %36 : vector<8x256xi1>, vector<8x256xf32>
    %c0_8 = arith.constant 0 : index
    %c0_9 = arith.constant 0 : index
    %c0_10 = arith.constant 0 : index
    %38 = vector.load %arg5[%c0_8, %c0_9, %c0_10] : memref<1x8x256xf32, #tpu.memory_space<vmem>>, vector<1x8x256xf32>
    %39 = vector.shape_cast %38 : vector<1x8x256xf32> to vector<8x256xf32>
    %40 = vector.shape_cast %37 : vector<8x256xf32> to vector<1x8x256xf32>
    tpu.vector_store %arg5[%c0_8, %c0_9, %c0_10], %40 {strides = array<i32>} : memref<1x8x256xf32, #tpu.memory_space<vmem>>, vector<1x8x256xf32>,
    return
  }
  func.func @transform_0(%arg0: i32, %arg1: i32) -> (i32, i32, i32) {
    %c0_i32 = arith.constant 0 : i32
    %c0_i32_0 = arith.constant 0 : i32
    return %arg0, %c0_i32, %arg1 : i32, i32, i32
  }
  func.func @transform_1(%arg0: i32, %arg1: i32) -> (i32, i32) {
    %c0_i32 = arith.constant 0 : i32
    %c0_i32_0 = arith.constant 0 : i32
    %c0_i32_1 = arith.constant 0 : i32
    return %c0_i32, %c0_i32_0 : i32, i32
  }
  func.func @transform_2(%arg0: i32, %arg1: i32) -> (i32, i32) {
    %c0_i32 = arith.constant 0 : i32
    %c0_i32_0 = arith.constant 0 : i32
    %c0_i32_1 = arith.constant 0 : i32
    return %c0_i32, %c0_i32_0 : i32, i32
  }
  func.func @transform_3(%arg0: i32, %arg1: i32) -> (i32, i32, i32) {
    %c0_i32 = arith.constant 0 : i32
    %c0_i32_0 = arith.constant 0 : i32
    return %arg0, %c0_i32, %arg1 : i32, i32, i32
  }
}

</mosaic_0001>

<llo_original>
// kernel: tpu_custom_call.1
$region0: #{tpu_custom_call.1}
  #allocation0 [shape = 'u32[]', space=smem, size = 0x4, offset = 0x4, fixed_abs, tag = 'smem constant byte address 0x4 - core index']
  #allocation1 [shape = 'u32[144,128]{1,0:T(1,128)}', space=vmem, size = 0x12000, scoped, tag = 'internal scratch']
  %s0 = inlined_call_operand.vmem [shape: f32[2,4,256], index: 0, kind: input, shape index: {}]
  %s1 = inlined_call_operand.vmem [shape: f32[8,4], index: 1, kind: input, shape index: {}]
  %s2 = inlined_call_operand.vmem [shape: f32[8,1], index: 2, kind: input, shape index: {}]
  %s3 = inlined_call_operand.hbm [shape: f32[2,8,256], index: 3, kind: output, shape index: {}]
  %s4 = sld [smem:[#allocation0]]
  $region45: #{tpu_custom_call.1} parent=0
    _
  %s6 = ssub.s32 1, %s4
  %s7 = scalar_select 0, %s6, %s4
  $region1: #{tpu_custom_call.1} parent=0
    #allocation2 [shape = 'u8[16384]{0}', space=vmem, size = 0x4000, scoped, tag = 'output window, operand 0']
    #allocation3 [shape = 's32[2]{0}', space=sflag, size = 0x8, scoped, tag = 'scoped memory for tpu_custom_call.1']
    %8 = vsyncpa [#allocation3], 0
    %s9 = scalar_lea.sflag [#allocation3], 1
    %10 = vsyncpa %s9, 0
    loop: start=0, step=1, limit=4
    $region2: #{tpu_custom_call.1} parent=1 // loop_pre_header
      _
    $region3: #{tpu_custom_call.1} parent=1 // loop_header
      %s12 = sphi 0, %s16
      %p13 = scmp.ge.s32.totalorder %s12, 4
      %s19 = sphi 0, %s31
      %s20 = sphi 0, %s27
      %s21 = sphi 0, %s19
      %s22 = sphi 0, %s20
      %s23 = sphi 0, %s21
      %s24 = sphi 0, %s22
      %s36 = sphi 0, %s38
      %s39 = sphi 0, %s36
      %s40 = sphi 0, %s39
      %s56 = sphi 0, %s40
      %s60 = sphi 0, %s60
      %s62 = sphi 0, %s60
      %s63 = sphi 0, %s62
      %s77 = sphi 0, %s63
      %s81 = sphi 0, %s81
      %s83 = sphi 0, %s81
      %s84 = sphi 0, %s83
      %s98 = sphi 0, %s84
      %s106 = sphi 0, %s108
      %s109 = sphi 0, %s106
      %s110 = sphi 0, %s109
      %s126 = sphi 0, %s110
    $region4: #{tpu_custom_call.1} parent=1 // loop_header_branch
      %15 = sbr.rel (%p13) target = $region8
    $region5: #{tpu_custom_call.1} parent=1 // loop_body
      %s17 = ssub.s32 %s12, 1
      %s18 = ssub.s32 %s12, 2
      %s25 = sadd.s32 1, %s20
      %p26 = scmp.ge.s32.totalorder %s25, 1
      %s27 = scalar_select %p26, 0, %s25
      %s28 = sadd.s32 1, %s19
      %s29 = scalar_select %p26, %s28, %s19
      %p30 = scmp.ge.s32.totalorder %s29, 2
      %s31 = scalar_select %p30, 0, %s29
      %s32 = ssub.s32 %s19, %s31
      %s33 = ssub.s32 %s20, %s27
      %s34 = sor.u32 %s32, %s33
      %p35 = scmp.eq.s32.totalorder %s34, 0
      %s37 = sadd.s32 %s36, 1
      %s38 = scalar_select %p35, %s36, %s37
      %p41 = pneg %p35
      %p42 = scmp.eq.s32.totalorder %s12, 1
      %p43 = por %p41, %p42
      %p44 = scmp.ne.s32.totalorder %s36, %s39
      %p45 = scmp.eq.s32.totalorder %s12, 0
      %p46 = por %p44, %p45
      %p47 = scmp.ne.s32.totalorder %s36, %s39
      %p48 = scmp.eq.s32.totalorder %s17, 1
      %p49 = por %p47, %p48
      %p50 = scmp.ne.s32.totalorder %s39, %s40
      %p51 = scmp.eq.s32.totalorder %s17, 0
      %p52 = por %p50, %p51
      %p53 = scmp.ne.s32.totalorder %s39, %s40
      %p54 = scmp.eq.s32.totalorder %s18, 1
      %p55 = por %p53, %p54
      %p57 = scmp.ne.s32.totalorder %s40, %s56
      %p58 = scmp.eq.s32.totalorder %s18, 0
      %p59 = por %p57, %p58
      %s61 = sadd.s32 %s60, 1
      %p64 = scmp.eq.s32.totalorder %s12, 1
      %p65 = scmp.ne.s32.totalorder %s60, %s62
      %p66 = scmp.eq.s32.totalorder %s12, 0
      %p67 = por %p65, %p66
      %p68 = scmp.ne.s32.totalorder %s60, %s62
      %p69 = scmp.eq.s32.totalorder %s17, 1
      %p70 = por %p68, %p69
      %p71 = scmp.ne.s32.totalorder %s62, %s63
      %p72 = scmp.eq.s32.totalorder %s17, 0
      %p73 = por %p71, %p72
      %p74 = scmp.ne.s32.totalorder %s62, %s63
      %p75 = scmp.eq.s32.totalorder %s18, 1
      %p76 = por %p74, %p75
      %p78 = scmp.ne.s32.totalorder %s63, %s77
      %p79 = scmp.eq.s32.totalorder %s18, 0
      %p80 = por %p78, %p79
      %s82 = sadd.s32 %s81, 1
      %p85 = scmp.eq.s32.totalorder %s12, 1
      %p86 = scmp.ne.s32.totalorder %s81, %s83
      %p87 = scmp.eq.s32.totalorder %s12, 0
      %p88 = por %p86, %p87
      %p89 = scmp.ne.s32.totalorder %s81, %s83
      %p90 = scmp.eq.s32.totalorder %s17, 1
      %p91 = por %p89, %p90
      %p92 = scmp.ne.s32.totalorder %s83, %s84
      %p93 = scmp.eq.s32.totalorder %s17, 0
      %p94 = por %p92, %p93
      %p95 = scmp.ne.s32.totalorder %s83, %s84
      %p96 = scmp.eq.s32.totalorder %s18, 1
      %p97 = por %p95, %p96
      %p99 = scmp.ne.s32.totalorder %s84, %s98
      %p100 = scmp.eq.s32.totalorder %s18, 0
      %p101 = por %p99, %p100
      %s102 = ssub.s32 %s19, %s31
      %s103 = ssub.s32 %s20, %s27
      %s104 = sor.u32 %s102, %s103
      %p105 = scmp.eq.s32.totalorder %s104, 0
      %s107 = sadd.s32 %s106, 1
      %s108 = scalar_select %p105, %s106, %s107
      %p111 = pneg %p105
      %p112 = scmp.eq.s32.totalorder %s12, 1
      %p113 = por %p111, %p112
      %p114 = scmp.ne.s32.totalorder %s106, %s109
      %p115 = scmp.eq.s32.totalorder %s12, 0
      %p116 = por %p114, %p115
      %p117 = scmp.ne.s32.totalorder %s106, %s109
      %p118 = scmp.eq.s32.totalorder %s17, 1
      %p119 = por %p117, %p118
      %p120 = scmp.ne.s32.totalorder %s109, %s110
      %p121 = scmp.eq.s32.totalorder %s17, 0
      %p122 = por %p120, %p121
      %p123 = scmp.ne.s32.totalorder %s109, %s110
      %p124 = scmp.eq.s32.totalorder %s18, 1
      %p125 = por %p123, %p124
      %p127 = scmp.ne.s32.totalorder %s110, %s126
      %p128 = scmp.eq.s32.totalorder %s18, 0
      %p129 = por %p127, %p128
      %p130 = scmp.le.s32.totalorder 1, %s12
      %p131 = scmp.lt.s32.totalorder %s12, 3
      %p132 = pnand %p130, %p131
      %p133 = pneg %p132
      // Predicated region
      $region9: #{tpu_custom_call.1} parent=5 // pred_check
        _
      $region10: #{tpu_custom_call.1} parent=5 // pred_check_branch
        %135 = sbr.rel (%p132) target = $region12
      $region11: #{tpu_custom_call.1} parent=5 // pred_region
        %s136 = ssub.s32 %s12, 1
        // Predicated region
        $region13: #{tpu_custom_call.1} parent=11 // pred_check
          %p137 = pneg %p73
        $region14: #{tpu_custom_call.1} parent=11 // pred_check_branch
          %139 = sbr.rel (%p137) target = $region16
        $region15: #{tpu_custom_call.1} parent=11 // pred_region
          _
        $region16: #{tpu_custom_call.1} parent=11 // pred_fallthru
          _
        // Predicated region
        $region17: #{tpu_custom_call.1} parent=11 // pred_check
          %p140 = pneg %p94
        $region18: #{tpu_custom_call.1} parent=11 // pred_check_branch
          %142 = sbr.rel (%p140) target = $region20
        $region19: #{tpu_custom_call.1} parent=11 // pred_region
          _
        $region20: #{tpu_custom_call.1} parent=11 // pred_fallthru
          _
      $region12: #{tpu_custom_call.1} parent=5 // pred_fallthru
        _
      %p143 = scmp.lt.s32.totalorder %s12, 2
      // Predicated region
      $region21: #{tpu_custom_call.1} parent=5 // pred_check
        %p144 = pneg %p143
      $region22: #{tpu_custom_call.1} parent=5 // pred_check_branch
        %146 = sbr.rel (%p144) target = $region24
      $region23: #{tpu_custom_call.1} parent=5 // pred_region
        // Predicated region
        $region25: #{tpu_custom_call.1} parent=23 // pred_check
          %p147 = pneg %p46
        $region26: #{tpu_custom_call.1} parent=23 // pred_check_branch
          %149 = sbr.rel (%p147) target = $region28
        $region27: #{tpu_custom_call.1} parent=23 // pred_region
          %s150 = smul.u32 2, %s20
          %p151 = scmp.lt.s32.totalorder %s19, 1
          %s152 = scalar_select %p151, %s19, 1
          %p153 = scmp.lt.s32.totalorder %s150, 1
          %s154 = scalar_select %p153, %s150, 1
          %s155 = smul.addr %s152, 2
          %s156 = sadd.s32 %s154, %s155
          %s157 = smul.addr %s156, 4
          %s158 = scalar_lea.vmem %s0, %s157
          %s159 = smul.u32 2, %s20
        $region28: #{tpu_custom_call.1} parent=23 // pred_fallthru
          _
      $region24: #{tpu_custom_call.1} parent=5 // pred_fallthru
        _
      %p160 = scmp.le.s32.totalorder 1, %s12
      %p161 = scmp.lt.s32.totalorder %s12, 3
      %p162 = pnand %p160, %p161
      %p163 = pneg %p162
      // Predicated region
      $region29: #{tpu_custom_call.1} parent=5 // pred_check
        _
      $region30: #{tpu_custom_call.1} parent=5 // pred_check_branch
        %165 = sbr.rel (%p162) target = $region32
      $region31: #{tpu_custom_call.1} parent=5 // pred_region
        %s166 = ssub.s32 %s12, 1
        %s167 = smul.u32 2, %s22
        %p168 = scmp.lt.s32.totalorder %s21, 1
        %s169 = scalar_select %p168, %s21, 1
        %p170 = scmp.lt.s32.totalorder %s167, 1
        %s171 = scalar_select %p170, %s167, 1
        %s172 = smul.addr %s169, 2
        %s173 = sadd.s32 %s171, %s172
        %s174 = smul.addr %s173, 4
        %s175 = scalar_lea.vmem %s0, %s174
        %p176 = pneg %p52
        %p177 = pneg %p49
        %p178 = pneg %p73
        %p179 = pneg %p70
        %p180 = pneg %p94
        %p181 = pneg %p91
        %p182 = pneg %p122
        %p183 = pneg %p119
        %s184 = sand.u32 %s109, 1
        %s185 = scalar_lea.sflag [#allocation3], %s184
        %s186 = sand.u32 %s109, 1
        %s187 = smul.addr %s186, 16
        %s188 = scalar_lea.vmem [#allocation2], %s187
        %s189 = smul.u32 2, %s22
        %p190 = scmp.lt.s32.totalorder %s21, 1
        %s191 = scalar_select %p190, %s21, 1
        %p192 = scmp.lt.s32.totalorder %s189, 1
        %s193 = scalar_select %p192, %s189, 1
        %s194 = smul.addr %s191, 2
        %s195 = sadd.s32 %s193, %s194
        %s196 = smul.addr %s195, 4
        %s197 = scalar_lea.vmem %s0, %s196
        %s198 = smul.u32 2, %s22
        %s199 = smul.u32 2, %s22
        %v200 = vld [vmem:[%s197] sm:$0xff]
        %v201 = vld [vmem:[%s1] sm:$0xff]
        %v202 = vand.u32 2147483647, %v200
        %v204 = vcombine.high %v202, %v202
        %vm206 = vcmask 1043456
        %v207 = vsel %vm206, %v202, -inf
        %v208 = vrot.slane %v207, 4
        %v209 = vmax.f32 %v207, %v208
        %v210 = vrot.slane %v209, 2
        %v211 = vmax.f32 %v209, %v210
        %v212 = vrot.slane %v211, 1
        %v213 = vmax.f32 %v211, %v212
        %v214 = vsel %vm206, %v204, -inf
        %v215 = vrot.slane %v214, 4
        %v216 = vmax.f32 %v214, %v215
        %v217 = vrot.slane %v216, 2
        %v218 = vmax.f32 %v216, %v217
        %v219 = vrot.slane %v218, 1
        %v220 = vmax.f32 %v218, %v219
        %vm221 = vcmp.gt.f32.partialorder %v213, 0.0
        %vm222 = vcmp.gt.f32.partialorder %v220, 0.0
        %224 = vset.pattern.permute.xlu0 0
        %225 = vperm.xlu0 %224, %v201
        %v226 = vpop.permute.xlu0 %225
        %v229 = vlaneseq
        %v230 = vshrl.u32 %v229, 7
        %v231 = vsub.s32 0, %v230
        %v232 = vrot.slane %v200, %v231
        %v233 = vlaneseq
        %v234 = vshrl.u32 %v233, 7
        %v235 = vsub.s32 4, %v234
        %v236 = vrot.slane %v200, %v235
        %v239 = vlaneseq
        %v240 = vshrl.u32 %v239, 7
        %v241 = vsub.s32 0, %v240
        %v242 = vrot.slane %v232, %v241
        %v243 = vlaneseq
        %v244 = vshrl.u32 %v243, 7
        %v245 = vsub.s32 0, %v244
        %v246 = vrot.slane %v236, %v245
        %v247 = vmul.f32 %v226, %v242
        %v248 = vmul.f32 %v226, %v246
        %249 = vset.pattern.permute.xlu0 1
        %250 = vperm.xlu0 %249, %v201
        %v251 = vpop.permute.xlu0 %250
        %v253 = vlaneseq
        %v254 = vshrl.u32 %v253, 7
        %v255 = vsub.s32 1, %v254
        %v256 = vrot.slane %v200, %v255
        %v257 = vlaneseq
        %v258 = vshrl.u32 %v257, 7
        %v259 = vsub.s32 5, %v258
        %v260 = vrot.slane %v200, %v259
        %v263 = vlaneseq
        %v264 = vshrl.u32 %v263, 7
        %v265 = vsub.s32 1, %v264
        %v266 = vrot.slane %v256, %v265
        %v267 = vlaneseq
        %v268 = vshrl.u32 %v267, 7
        %v269 = vsub.s32 1, %v268
        %v270 = vrot.slane %v260, %v269
        %v271 = vmul.f32 %v251, %v266
        %v272 = vmul.f32 %v251, %v270
        %v273 = vadd.f32 %v247, %v271
        %v274 = vadd.f32 %v248, %v272
        %275 = vset.pattern.permute.xlu0 2
        %276 = vperm.xlu0 %275, %v201
        %v277 = vpop.permute.xlu0 %276
        %v279 = vlaneseq
        %v280 = vshrl.u32 %v279, 7
        %v281 = vsub.s32 2, %v280
        %v282 = vrot.slane %v200, %v281
        %v283 = vlaneseq
        %v284 = vshrl.u32 %v283, 7
        %v285 = vsub.s32 6, %v284
        %v286 = vrot.slane %v200, %v285
        %v289 = vlaneseq
        %v290 = vshrl.u32 %v289, 7
        %v291 = vsub.s32 2, %v290
        %v292 = vrot.slane %v282, %v291
        %v293 = vlaneseq
        %v294 = vshrl.u32 %v293, 7
        %v295 = vsub.s32 2, %v294
        %v296 = vrot.slane %v286, %v295
        %v297 = vmul.f32 %v277, %v292
        %v298 = vmul.f32 %v277, %v296
        %v299 = vadd.f32 %v273, %v297
        %v300 = vadd.f32 %v274, %v298
        %301 = vset.pattern.permute.xlu0 3
        %302 = vperm.xlu0 %301, %v201
        %v303 = vpop.permute.xlu0 %302
        %v305 = vlaneseq
        %v306 = vshrl.u32 %v305, 7
        %v307 = vsub.s32 3, %v306
        %v308 = vrot.slane %v200, %v307
        %v309 = vlaneseq
        %v310 = vshrl.u32 %v309, 7
        %v311 = vsub.s32 7, %v310
        %v312 = vrot.slane %v200, %v311
        %v315 = vlaneseq
        %v316 = vshrl.u32 %v315, 7
        %v317 = vsub.s32 3, %v316
        %v318 = vrot.slane %v308, %v317
        %v319 = vlaneseq
        %v320 = vshrl.u32 %v319, 7
        %v321 = vsub.s32 3, %v320
        %v322 = vrot.slane %v312, %v321
        %v323 = vmul.f32 %v303, %v318
        %v324 = vmul.f32 %v303, %v322
        %v325 = vadd.f32 %v299, %v323
        %v326 = vadd.f32 %v300, %v324
        %v327 = vld [vmem:[%s2] sm:$0xff]
        %329 = vset.pattern.permute.xlu0 0
        %330 = vperm.xlu0 %329, %v327
        %v331 = vpop.permute.xlu0 %330
        %v333 = vadd.f32 %v325, %v331
        %v334 = vadd.f32 %v326, %v331
        %v335 = vsel %vm221, 1, 0
        %v336 = vsel %vm222, 1, 0
        %vm337 = vcmp.eq.s32.totalorder %v335, 1
        %vm338 = vcmp.eq.s32.totalorder %v336, 1
        %v339 = vsel %vm337, %v333, 0.0
        %v340 = vsel %vm338, %v334, 0.0
        %341 = vst [vmem:[%s188] sm:$0xff] %v339
        %342 = vst [vmem:[%s188 + $0x8] sm:$0xff] %v340
        %s343 = sand.u32 %s109, 1
        %s344 = scalar_lea.sflag [#allocation3], %s343
        %s345 = sand.u32 %s109, 1
        %s346 = smul.addr %s345, 16
        %s347 = scalar_lea.vmem [#allocation2], %s346
        // Predicated region
        $region33: #{tpu_custom_call.1} parent=31 // pred_check
          %p348 = pneg %p119
        $region34: #{tpu_custom_call.1} parent=31 // pred_check_branch
          %350 = sbr.rel (%p348) target = $region36
        $region35: #{tpu_custom_call.1} parent=31 // pred_region
          %s351 = smul.u32 2, %s22
          %s353 = ssub.s32 256, 256
          %354 = vsyncadd %s344, %s353
          %s355 = smul.addr %s21, 2
          %s356 = sadd.s32 %s351, %s355
          %s357 = smul.addr %s356, 128
          %s358 = scalar_lea.hbm %s3, %s357
          %s360 = sshll.u32 %s347, 4
          %s361 = int_to_ptr.vmem [resolvable:$true] %s360
          %363 = dma.vmem_to_hbm [thread:$0]  %s361, 256, %s358, %s344
        $region36: #{tpu_custom_call.1} parent=31 // pred_fallthru
          _
      $region32: #{tpu_custom_call.1} parent=5 // pred_fallthru
        _
      %p364 = scmp.le.s32.totalorder 2, %s12
      // Predicated region
      $region37: #{tpu_custom_call.1} parent=5 // pred_check
        %p365 = pneg %p364
      $region38: #{tpu_custom_call.1} parent=5 // pred_check_branch
        %367 = sbr.rel (%p365) target = $region40
      $region39: #{tpu_custom_call.1} parent=5 // pred_region
        %s368 = ssub.s32 %s12, 2
        // Predicated region
        $region41: #{tpu_custom_call.1} parent=39 // pred_check
          %p369 = pneg %p125
        $region42: #{tpu_custom_call.1} parent=39 // pred_check_branch
          %371 = sbr.rel (%p369) target = $region44
        $region43: #{tpu_custom_call.1} parent=39 // pred_region
          %s372 = sand.u32 %s110, 1
          %s373 = scalar_lea.sflag [#allocation3], %s372
          %s374 = sand.u32 %s110, 1
          %s375 = smul.addr %s374, 16
          %s376 = scalar_lea.vmem [#allocation2], %s375
          %377 = dma.done %s373, 256
        $region44: #{tpu_custom_call.1} parent=39 // pred_fallthru
          _
      $region40: #{tpu_custom_call.1} parent=5 // pred_fallthru
        _
    $region6: #{tpu_custom_call.1} parent=1 // loop_footer
      %s16 = sadd.s32 1, %s12
    $region7: #{tpu_custom_call.1} parent=1 // loop_footer_branch
      %11 = sbr.rel target = $region3
    $region8: #{tpu_custom_call.1} parent=1 // loop_exit
      _
    %378 = vsyncpa [#allocation3], 1
    %s379 = scalar_lea.sflag [#allocation3], 1
    %380 = vsyncpa %s379, 1

</llo_original>
